<compile_context>
chip_gen: v6e
topology: v6e:2x2x1
jax: 0.10.0
libtpu: 0.0.40
codegen_flags: <defaults>
</compile_context>

<pallas_src>
import functools

import jax
import jax.numpy as jnp
from jax.experimental import pallas as pl
from jax.experimental.pallas import tpu as pltpu


def _basic_block_kernel(B, Hh, L,
                        x_ref, a1_ref, a2_ref, b_ref,
                        o_ref, xp_ref, hp_ref):
    """B images per grid step; each image is (Hh, L) = (H/2, 2*W*C) packed."""
    zrow = jnp.zeros((1, L), jnp.float32)
    b1 = b_ref[0:1, :]                     # folded BN1 bias, (1, L)
    b2 = b_ref[1:2, :]                     # folded BN2 bias, (1, L)

    for b in range(B):                     # static unroll over images in block
        base = b * (Hh + 2)
        x = x_ref[b]                       # (Hh, L) f32, lane-packed row pairs

        # Row-padded copy of the input: only the two vertical border rows are
        # zeroed (horizontal padding + row-pair coupling live in the banded
        # weights).  Re-done every step: scratch is per-core under megacore
        # sharding, so a program_id==0 gate would be unsound.
        xp_ref[base:base + 1, :] = zrow
        xp_ref[base + Hh + 1:base + Hh + 2, :] = zrow
        xp_ref[base + 1:base + 1 + Hh, :] = x

        # ---- conv1 (+ folded BN1 scale): 3 MXU matmuls, K = N = L ----
        # NOTE: operands cast to bf16 per tap (f32 scratch kept: bf16 scratch
        # with sublane-offset slices risks packed-layout shuffles).
        acc1 = jnp.dot(xp_ref[base:base + Hh, :].astype(jnp.bfloat16),
                       a1_ref[0], preferred_element_type=jnp.float32)
        for t in (1, 2):
            acc1 = acc1 + jnp.dot(
                xp_ref[base + t:base + t + Hh, :].astype(jnp.bfloat16),
                a1_ref[t], preferred_element_type=jnp.float32)

        # ---- bn1 bias + relu ----
        h1 = jnp.maximum(acc1 + b1, 0.0)

        # Row-padded intermediate for conv2.
        hp_ref[base:base + 1, :] = zrow
        hp_ref[base + Hh + 1:base + Hh + 2, :] = zrow
        hp_ref[base + 1:base + 1 + Hh, :] = h1

        # ---- conv2 (+ folded BN2 scale) ----
        acc2 = jnp.dot(hp_ref[base:base + Hh, :].astype(jnp.bfloat16),
                       a2_ref[0], preferred_element_type=jnp.float32)
        for t in (1, 2):
            acc2 = acc2 + jnp.dot(
                hp_ref[base + t:base + t + Hh, :].astype(jnp.bfloat16),
                a2_ref[t], preferred_element_type=jnp.float32)

        # ---- bn2 bias + residual add (exact f32 identity) + relu ----
        o_ref[b] = jnp.maximum(acc2 + b2 + x, 0.0).astype(o_ref.dtype)


def _packed_band_weights(w_oihw, W, scale=None):
    """torch conv weight (Cout, Cin, 3, 3) -> (3, 2*W*Cin, 2*W*Cout) bands.

    Tap t maps one padded lane-packed row pair (2*W*Cin,) to one output row
    pair (2*W*Cout,), folding the kw taps, the width dimension, the horizontal
    zero padding and the vertical coupling between the two packed rows into
    the matmul contraction.  Optional per-output-channel `scale` (folded BN)
    is absorbed into the weights."""
    co, ci = w_oihw.shape[0], w_oihw.shape[1]
    wt = jnp.transpose(w_oihw, (2, 3, 1, 0)).astype(jnp.float32)  # (kh,kw,ci,co)
    if scale is not None:
        wt = wt * scale[None, None, None, :]

    # Single-row bands A_kh: (W*ci, W*co).  E[w_in, w_out] = 1 iff
    # w_in == w_out + kw - 1; out-of-range taps drop == zero horizontal pad.
    A = []
    for kh in range(3):
        a = jnp.zeros((W * ci, W * co), jnp.float32)
        for kw in range(3):
            e = jnp.eye(W, k=1 - kw, dtype=jnp.float32)
            a = a + jnp.einsum('pq,ij->piqj', e, wt[kh, kw]).reshape(W * ci,
                                                                     W * co)
        A.append(a)

    Z = jnp.zeros((W * ci, W * co), jnp.float32)
    # Row-pair coupling.  Output packed row j = image rows (2j, 2j+1); tap t
    # reads packed row j-1+t.  Block rows = input halves, cols = output halves.
    B0 = jnp.block([[Z, Z], [A[0], Z]])        # packed row j-1: row 2j-1 -> 2j
    B1 = jnp.block([[A[1], A[0]], [A[2], A[1]]])   # packed row j
    B2 = jnp.block([[Z, A[2]], [Z, Z]])        # packed row j+1: row 2j+2 -> 2j+1
    return jnp.stack([B0, B1, B2])             # (3, 2*W*ci, 2*W*co)


def _choose_block_batch(N, Hh, target_m=128):
    """Images per grid step: aim for M ~ target_m rows, but keep >= 2 grid
    steps when N >= 2 so the 'parallel' axis can shard across TensorCores."""
    b = max(1, target_m // max(Hh, 1))
    cap = N if N < 2 else max(1, N // 2)
    b = min(b, cap)
    while N % b:
        b -= 1
    return b


def basic_block(x_nchw, w1, w2, g1, be1, m1, v1, g2, be2, m2, v2, eps=1e-5):
    """BasicBlock forward (stride=1, downsample=None). x_nchw: (N, C, H, W)."""
    N, C, H, W = x_nchw.shape
    assert w1.shape == (C, C, 3, 3) and w2.shape == (C, C, 3, 3), \
        "only the stride=1 / no-downsample BasicBlock configuration is supported"
    assert H % 2 == 0, "row-pair lane packing requires even H"
    Hh, L = H // 2, 2 * W * C

    # NCHW -> lane-packed row pairs (N, H/2, 2*W*C), channels fastest.
    x_packed = jnp.transpose(x_nchw, (0, 2, 3, 1)).reshape(N, Hh, L)

    # Fold eval-mode BatchNorm: scale goes into the banded weights, bias stays.
    inv1 = g1 / jnp.sqrt(v1 + eps)
    inv2 = g2 / jnp.sqrt(v2 + eps)
    a1 = _packed_band_weights(w1, W, scale=inv1).astype(jnp.bfloat16)
    a2 = _packed_band_weights(w2, W, scale=inv2).astype(jnp.bfloat16)
    bias = jnp.stack([jnp.tile(be1 - m1 * inv1, 2 * W),
                      jnp.tile(be2 - m2 * inv2, 2 * W)])       # (2, L) f32

    B = _choose_block_batch(N, Hh)
    nblk = N // B

    kernel = functools.partial(_basic_block_kernel, B, Hh, L)
    out_packed = pl.pallas_call(
        kernel,
        out_shape=jax.ShapeDtypeStruct((N, Hh, L), x_nchw.dtype),
        grid=(nblk,),
        in_specs=[
            pl.BlockSpec((B, Hh, L), lambda n: (n, 0, 0)),   # activations
            pl.BlockSpec((3, L, L), lambda n: (0, 0, 0)),    # conv1 bands (bf16)
            pl.BlockSpec((3, L, L), lambda n: (0, 0, 0)),    # conv2 bands (bf16)
            pl.BlockSpec((2, L), lambda n: (0, 0)),          # packed BN biases
        ],
        out_specs=pl.BlockSpec((B, Hh, L), lambda n: (n, 0, 0)),
        scratch_shapes=[pltpu.VMEM((B * (Hh + 2), L), jnp.float32),
                        pltpu.VMEM((B * (Hh + 2), L), jnp.float32)],
        compiler_params=pltpu.CompilerParams(
            dimension_semantics=("parallel",)),
    )(x_packed, a1, a2, bias)

    # lane-packed (N, H/2, 2*W*C) -> NCHW
    return jnp.transpose(out_packed.reshape(N, H, W, C), (0, 3, 1, 2))


def _ref_basic_block(x, w1, w2, g1, be1, m1, v1, g2, be2, m2, v2, eps=1e-5):
    """Pure-JAX reference (NCHW) matching the PyTorch module in eval mode."""
    dn = jax.lax.conv_dimension_numbers(x.shape, w1.shape,
                                        ("NCHW", "OIHW", "NCHW"))

    def conv(a, w):
        return jax.lax.conv_general_dilated(a, w, (1, 1), ((1, 1), (1, 1)),
                                            dimension_numbers=dn)

    def bn(a, g, b, m, v):
        sh = (1, -1, 1, 1)
        return (a - m.reshape(sh)) / jnp.sqrt(v.reshape(sh) + eps) \
            * g.reshape(sh) + b.reshape(sh)

    out = jax.nn.relu(bn(conv(x, w1), g1, be1, m1, v1))
    out = bn(conv(out, w2), g2, be2, m2, v2)
    return jax.nn.relu(out + x)


if __name__ == "__main__":
    N, C, H, W = 2, 4, 16, 16          # inplanes = planes = 4, stride = 1
    key = jax.random.PRNGKey(0)
    ks = jax.random.split(key, 9)

    x = jax.random.normal(ks[0], (N, C, H, W), jnp.float32)
    w1 = jax.random.normal(ks[1], (C, C, 3, 3), jnp.float32) * 0.1
    w2 = jax.random.normal(ks[2], (C, C, 3, 3), jnp.float32) * 0.1
    g1 = jax.random.uniform(ks[3], (C,), jnp.float32, 0.5, 1.5)
    be1 = jax.random.normal(ks[4], (C,), jnp.float32) * 0.1
    m1 = jax.random.normal(ks[5], (C,), jnp.float32) * 0.1
    v1 = jax.random.uniform(ks[6], (C,), jnp.float32, 0.5, 1.5)
    g2 = jax.random.uniform(ks[7], (C,), jnp.float32, 0.5, 1.5)
    be2 = jax.random.normal(ks[8], (C,), jnp.float32) * 0.1
    m2 = jnp.zeros((C,), jnp.float32)
    v2 = jnp.ones((C,), jnp.float32)

    out = basic_block(x, w1, w2, g1, be1, m1, v1, g2, be2, m2, v2)
    out = jax.block_until_ready(out)

    ref = _ref_basic_block(x, w1, w2, g1, be1, m1, v1, g2, be2, m2, v2)
    assert out.shape == (N, C, H, W)
    # Tolerance loosened vs a pure-f32 path because conv operands (and the
    # folded BN scale) are bf16 on the MXU with f32 accumulation; observed
    # error is O(1e-2) worst case.
    err = float(jnp.max(jnp.abs(out - ref)))
    assert err < 5e-2, f"max abs err {err}"

    print("KERNEL_OK")
</pallas_src>

<mosaic_0001>
module attributes {stable_mosaic.version = 11 : i64} {
  func.func @_basic_block_kernel(%arg0: i32, %arg1: memref<1x8x128xf32, #tpu.memory_space<vmem>>, %arg2: memref<3x128x128xbf16, #tpu.memory_space<vmem>>, %arg3: memref<3x128x128xbf16, #tpu.memory_space<vmem>>, %arg4: memref<2x128xf32, #tpu.memory_space<vmem>>, %arg5: memref<1x8x128xf32, #tpu.memory_space<vmem>>, %arg6: memref<10x128xf32, #tpu.memory_space<vmem>>, %arg7: memref<10x128xf32, #tpu.memory_space<vmem>>) attributes {dimension_semantics = [#tpu.dimension_semantics<parallel>], iteration_bounds = array<i64: 2>, scalar_prefetch = 0 : i64, scratch_operands = 2 : i64, tpu.core_type = #tpu.core_type<tc>, window_params = [{transform_indices = @transform_0, window_bounds = array<i64: 1, 8, 128>}, {pipeline_mode = #tpu.pipeline_mode<synchronous>, transform_indices = @transform_1, window_bounds = array<i64: 3, 128, 128>}, {pipeline_mode = #tpu.pipeline_mode<synchronous>, transform_indices = @transform_2, window_bounds = array<i64: 3, 128, 128>}, {pipeline_mode = #tpu.pipeline_mode<synchronous>, transform_indices = @transform_3, window_bounds = array<i64: 2, 128>}, {transform_indices = @transform_4, window_bounds = array<i64: 1, 8, 128>}]} {
    %cst = arith.constant 0.000000e+00 : f32
    %0 = vector.broadcast %cst : f32 to vector<1x128xf32>
    %c0 = arith.constant 0 : index
    %c0_0 = arith.constant 0 : index
    %1 = vector.load %arg4[%c0, %c0_0] : memref<2x128xf32, #tpu.memory_space<vmem>>, vector<1x128xf32>
    %c1 = arith.constant 1 : index
    %c0_1 = arith.constant 0 : index
    %2 = vector.load %arg4[%c1, %c0_1] : memref<2x128xf32, #tpu.memory_space<vmem>>, vector<1x128xf32>
    %c0_2 = arith.constant 0 : index
    %c0_3 = arith.constant 0 : index
    %c0_4 = arith.constant 0 : index
    %3 = vector.load %arg1[%c0_2, %c0_3, %c0_4] : memref<1x8x128xf32, #tpu.memory_space<vmem>>, vector<1x8x128xf32>
    %4 = vector.shape_cast %3 : vector<1x8x128xf32> to vector<8x128xf32>
    %c0_5 = arith.constant 0 : index
    %c0_6 = arith.constant 0 : index
    %5 = vector.load %arg6[%c0_5, %c0_6] : memref<10x128xf32, #tpu.memory_space<vmem>>, vector<1x128xf32>
    tpu.vector_store %arg6[%c0_5, %c0_6], %0 {strides = array<i32>} : memref<10x128xf32, #tpu.memory_space<vmem>>, vector<1x128xf32>,
    %c9 = arith.constant 9 : index
    %c0_7 = arith.constant 0 : index
    %6 = vector.load %arg6[%c9, %c0_7] : memref<10x128xf32, #tpu.memory_space<vmem>>, vector<1x128xf32>
    tpu.vector_store %arg6[%c9, %c0_7], %0 {strides = array<i32>} : memref<10x128xf32, #tpu.memory_space<vmem>>, vector<1x128xf32>,
    %c1_8 = arith.constant 1 : index
    %c0_9 = arith.constant 0 : index
    %7 = vector.load %arg6[%c1_8, %c0_9] : memref<10x128xf32, #tpu.memory_space<vmem>>, vector<8x128xf32>
    tpu.vector_store %arg6[%c1_8, %c0_9], %4 {strides = array<i32>} : memref<10x128xf32, #tpu.memory_space<vmem>>, vector<8x128xf32>,
    %c0_10 = arith.constant 0 : index
    %c0_11 = arith.constant 0 : index
    %8 = vector.load %arg6[%c0_10, %c0_11] : memref<10x128xf32, #tpu.memory_space<vmem>>, vector<8x128xf32>
    %9 = arith.truncf %8 : vector<8x128xf32> to vector<8x128xbf16>
    %c0_12 = arith.constant 0 : index
    %c0_13 = arith.constant 0 : index
    %c0_14 = arith.constant 0 : index
    %10 = vector.load %arg2[%c0_12, %c0_13, %c0_14] : memref<3x128x128xbf16, #tpu.memory_space<vmem>>, vector<1x128x128xbf16>
    %11 = vector.shape_cast %10 : vector<1x128x128xbf16> to vector<128x128xbf16>
    %cst_15 = arith.constant dense<0.000000e+00> : vector<8x128xf32>
    %12 = tpu.matmul %9, %11, %cst_15 {dimension_numbers = #tpu.dot_dimension_numbers<[1], [0], [0], [1], [0, 0, 1, 1], [], []>} : vector<8x128xbf16>, vector<128x128xbf16>, vector<8x128xf32> -> vector<8x128xf32>
    %c1_16 = arith.constant 1 : index
    %c0_17 = arith.constant 0 : index
    %13 = vector.load %arg6[%c1_16, %c0_17] : memref<10x128xf32, #tpu.memory_space<vmem>>, vector<8x128xf32>
    %14 = arith.truncf %13 : vector<8x128xf32> to vector<8x128xbf16>
    %c1_18 = arith.constant 1 : index
    %c0_19 = arith.constant 0 : index
    %c0_20 = arith.constant 0 : index
    %15 = vector.load %arg2[%c1_18, %c0_19, %c0_20] : memref<3x128x128xbf16, #tpu.memory_space<vmem>>, vector<1x128x128xbf16>
    %16 = vector.shape_cast %15 : vector<1x128x128xbf16> to vector<128x128xbf16>
    %cst_21 = arith.constant dense<0.000000e+00> : vector<8x128xf32>
    %17 = tpu.matmul %14, %16, %cst_21 {dimension_numbers = #tpu.dot_dimension_numbers<[1], [0], [0], [1], [0, 0, 1, 1], [], []>} : vector<8x128xbf16>, vector<128x128xbf16>, vector<8x128xf32> -> vector<8x128xf32>
    %18 = arith.addf %12, %17 : vector<8x128xf32>
    %c2 = arith.constant 2 : index
    %c0_22 = arith.constant 0 : index
    %19 = vector.load %arg6[%c2, %c0_22] : memref<10x128xf32, #tpu.memory_space<vmem>>, vector<8x128xf32>
    %20 = arith.truncf %19 : vector<8x128xf32> to vector<8x128xbf16>
    %c2_23 = arith.constant 2 : index
    %c0_24 = arith.constant 0 : index
    %c0_25 = arith.constant 0 : index
    %21 = vector.load %arg2[%c2_23, %c0_24, %c0_25] : memref<3x128x128xbf16, #tpu.memory_space<vmem>>, vector<1x128x128xbf16>
    %22 = vector.shape_cast %21 : vector<1x128x128xbf16> to vector<128x128xbf16>
    %cst_26 = arith.constant dense<0.000000e+00> : vector<8x128xf32>
    %23 = tpu.matmul %20, %22, %cst_26 {dimension_numbers = #tpu.dot_dimension_numbers<[1], [0], [0], [1], [0, 0, 1, 1], [], []>} : vector<8x128xbf16>, vector<128x128xbf16>, vector<8x128xf32> -> vector<8x128xf32>
    %24 = arith.addf %18, %23 : vector<8x128xf32>
    %25 = vector.broadcast %1 : vector<1x128xf32> to vector<8x128xf32>
    %26 = arith.addf %24, %25 : vector<8x128xf32>
    %cst_27 = arith.constant 0.000000e+00 : f32
    %27 = vector.broadcast %cst_27 : f32 to vector<8x128xf32>
    %28 = arith.maximumf %26, %27 : vector<8x128xf32>
    %c0_28 = arith.constant 0 : index
    %c0_29 = arith.constant 0 : index
    %29 = vector.load %arg7[%c0_28, %c0_29] : memref<10x128xf32, #tpu.memory_space<vmem>>, vector<1x128xf32>
    tpu.vector_store %arg7[%c0_28, %c0_29], %0 {strides = array<i32>} : memref<10x128xf32, #tpu.memory_space<vmem>>, vector<1x128xf32>,
    %c9_30 = arith.constant 9 : index
    %c0_31 = arith.constant 0 : index
    %30 = vector.load %arg7[%c9_30, %c0_31] : memref<10x128xf32, #tpu.memory_space<vmem>>, vector<1x128xf32>
    tpu.vector_store %arg7[%c9_30, %c0_31], %0 {strides = array<i32>} : memref<10x128xf32, #tpu.memory_space<vmem>>, vector<1x128xf32>,
    %c1_32 = arith.constant 1 : index
    %c0_33 = arith.constant 0 : index
    %31 = vector.load %arg7[%c1_32, %c0_33] : memref<10x128xf32, #tpu.memory_space<vmem>>, vector<8x128xf32>
    tpu.vector_store %arg7[%c1_32, %c0_33], %28 {strides = array<i32>} : memref<10x128xf32, #tpu.memory_space<vmem>>, vector<8x128xf32>,
    %c0_34 = arith.constant 0 : index
    %c0_35 = arith.constant 0 : index
    %32 = vector.load %arg7[%c0_34, %c0_35] : memref<10x128xf32, #tpu.memory_space<vmem>>, vector<8x128xf32>
    %33 = arith.truncf %32 : vector<8x128xf32> to vector<8x128xbf16>
    %c0_36 = arith.constant 0 : index
    %c0_37 = arith.constant 0 : index
    %c0_38 = arith.constant 0 : index
    %34 = vector.load %arg3[%c0_36, %c0_37, %c0_38] : memref<3x128x128xbf16, #tpu.memory_space<vmem>>, vector<1x128x128xbf16>
    %35 = vector.shape_cast %34 : vector<1x128x128xbf16> to vector<128x128xbf16>
    %cst_39 = arith.constant dense<0.000000e+00> : vector<8x128xf32>
    %36 = tpu.matmul %33, %35, %cst_39 {dimension_numbers = #tpu.dot_dimension_numbers<[1], [0], [0], [1], [0, 0, 1, 1], [], []>} : vector<8x128xbf16>, vector<128x128xbf16>, vector<8x128xf32> -> vector<8x128xf32>
    %c1_40 = arith.constant 1 : index
    %c0_41 = arith.constant 0 : index
    %37 = vector.load %arg7[%c1_40, %c0_41] : memref<10x128xf32, #tpu.memory_space<vmem>>, vector<8x128xf32>
    %38 = arith.truncf %37 : vector<8x128xf32> to vector<8x128xbf16>
    %c1_42 = arith.constant 1 : index
    %c0_43 = arith.constant 0 : index
    %c0_44 = arith.constant 0 : index
    %39 = vector.load %arg3[%c1_42, %c0_43, %c0_44] : memref<3x128x128xbf16, #tpu.memory_space<vmem>>, vector<1x128x128xbf16>
    %40 = vector.shape_cast %39 : vector<1x128x128xbf16> to vector<128x128xbf16>
    %cst_45 = arith.constant dense<0.000000e+00> : vector<8x128xf32>
    %41 = tpu.matmul %38, %40, %cst_45 {dimension_numbers = #tpu.dot_dimension_numbers<[1], [0], [0], [1], [0, 0, 1, 1], [], []>} : vector<8x128xbf16>, vector<128x128xbf16>, vector<8x128xf32> -> vector<8x128xf32>
    %42 = arith.addf %36, %41 : vector<8x128xf32>
    %c2_46 = arith.constant 2 : index
    %c0_47 = arith.constant 0 : index
    %43 = vector.load %arg7[%c2_46, %c0_47] : memref<10x128xf32, #tpu.memory_space<vmem>>, vector<8x128xf32>
    %44 = arith.truncf %43 : vector<8x128xf32> to vector<8x128xbf16>
    %c2_48 = arith.constant 2 : index
    %c0_49 = arith.constant 0 : index
    %c0_50 = arith.constant 0 : index
    %45 = vector.load %arg3[%c2_48, %c0_49, %c0_50] : memref<3x128x128xbf16, #tpu.memory_space<vmem>>, vector<1x128x128xbf16>
    %46 = vector.shape_cast %45 : vector<1x128x128xbf16> to vector<128x128xbf16>
    %cst_51 = arith.constant dense<0.000000e+00> : vector<8x128xf32>
    %47 = tpu.matmul %44, %46, %cst_51 {dimension_numbers = #tpu.dot_dimension_numbers<[1], [0], [0], [1], [0, 0, 1, 1], [], []>} : vector<8x128xbf16>, vector<128x128xbf16>, vector<8x128xf32> -> vector<8x128xf32>
    %48 = arith.addf %42, %47 : vector<8x128xf32>
    %49 = vector.broadcast %2 : vector<1x128xf32> to vector<8x128xf32>
    %50 = arith.addf %48, %49 : vector<8x128xf32>
    %51 = arith.addf %50, %4 : vector<8x128xf32>
    %cst_52 = arith.constant 0.000000e+00 : f32
    %52 = vector.broadcast %cst_52 : f32 to vector<8x128xf32>
    %53 = arith.maximumf %51, %52 : vector<8x128xf32>
    %c0_53 = arith.constant 0 : index
    %c0_54 = arith.constant 0 : index
    %c0_55 = arith.constant 0 : index
    %54 = vector.load %arg5[%c0_53, %c0_54, %c0_55] : memref<1x8x128xf32, #tpu.memory_space<vmem>>, vector<1x8x128xf32>
    %55 = vector.shape_cast %54 : vector<1x8x128xf32> to vector<8x128xf32>
    %56 = vector.shape_cast %53 : vector<8x128xf32> to vector<1x8x128xf32>
    tpu.vector_store %arg5[%c0_53, %c0_54, %c0_55], %56 {strides = array<i32>} : memref<1x8x128xf32, #tpu.memory_space<vmem>>, vector<1x8x128xf32>,
    return
  }
  func.func @transform_0(%arg0: i32) -> (i32, i32, i32) {
    %c0_i32 = arith.constant 0 : i32
    %c0_i32_0 = arith.constant 0 : i32
    %c0_i32_1 = arith.constant 0 : i32
    return %arg0, %c0_i32, %c0_i32_0 : i32, i32, i32
  }
  func.func @transform_1(%arg0: i32) -> (i32, i32, i32) {
    %c0_i32 = arith.constant 0 : i32
    %c0_i32_0 = arith.constant 0 : i32
    %c0_i32_1 = arith.constant 0 : i32
    %c0_i32_2 = arith.constant 0 : i32
    return %c0_i32, %c0_i32_0, %c0_i32_1 : i32, i32, i32
  }
  func.func @transform_2(%arg0: i32) -> (i32, i32, i32) {
    %c0_i32 = arith.constant 0 : i32
    %c0_i32_0 = arith.constant 0 : i32
    %c0_i32_1 = arith.constant 0 : i32
    %c0_i32_2 = arith.constant 0 : i32
    return %c0_i32, %c0_i32_0, %c0_i32_1 : i32, i32, i32
  }
  func.func @transform_3(%arg0: i32) -> (i32, i32) {
    %c0_i32 = arith.constant 0 : i32
    %c0_i32_0 = arith.constant 0 : i32
    %c0_i32_1 = arith.constant 0 : i32
    return %c0_i32, %c0_i32_0 : i32, i32
  }
  func.func @transform_4(%arg0: i32) -> (i32, i32, i32) {
    %c0_i32 = arith.constant 0 : i32
    %c0_i32_0 = arith.constant 0 : i32
    %c0_i32_1 = arith.constant 0 : i32
    return %arg0, %c0_i32, %c0_i32_0 : i32, i32, i32
  }
}

</mosaic_0001>

<llo_original>
// kernel: tpu_custom_call.1
$region0: #{tpu_custom_call.1}
  #allocation0 [shape = 'u32[]', space=smem, size = 0x4, offset = 0x4, fixed_abs, tag = 'smem constant byte address 0x4 - core index']
  #allocation1 [shape = 'u32[144,128]{1,0:T(1,128)}', space=vmem, size = 0x12000, scoped, tag = 'internal scratch']
  #allocation2 [shape = 'f32[10,128]{1,0:T(8,128)}', space=vmem, size = 0x2000, scoped, tag = 'scratch operand']
  #allocation3 [shape = 'f32[10,128]{1,0:T(8,128)}', space=vmem, size = 0x2000, scoped, tag = 'scratch operand']
  %s0 = inlined_call_operand.hbm [shape: f32[2,8,128], index: 0, kind: input, shape index: {}]
  %s1 = inlined_call_operand.hbm [shape: bf16[3,128,128], index: 1, kind: input, shape index: {}]
  %s2 = inlined_call_operand.hbm [shape: bf16[3,128,128], index: 2, kind: input, shape index: {}]
  %s3 = inlined_call_operand.vmem [shape: f32[2,128], index: 3, kind: input, shape index: {}]
  %s4 = inlined_call_operand.hbm [shape: f32[2,8,128], index: 4, kind: output, shape index: {}]
  %s5 = sld [smem:[#allocation0]]
  $region61: #{tpu_custom_call.1} parent=0
    _
  %s7 = ssub.s32 1, %s5
  %s8 = scalar_select 0, %s7, %s5
  $region1: #{tpu_custom_call.1} parent=0
    #allocation4 [shape = 'u8[8192]{0}', space=vmem, size = 0x2000, scoped, tag = 'input window, operand 0']
    #allocation5 [shape = 's32[2]{0}', space=sflag, size = 0x8, scoped, tag = 'scoped memory for tpu_custom_call.1']
    #allocation6 [shape = 's32[2]{0}', space=sflag, size = 0x8, scoped, tag = 'scoped memory for tpu_custom_call.1']
    #allocation7 [shape = 'u8[98304]{0}', space=vmem, size = 0x18000, scoped, tag = 'input window, operand 1, single buffered']
    #allocation8 [shape = 's32[1]{0}', space=sflag, size = 0x4, scoped, tag = 'scoped memory for tpu_custom_call.1']
    #allocation9 [shape = 'u8[98304]{0}', space=vmem, size = 0x18000, scoped, tag = 'input window, operand 2, single buffered']
    #allocation10 [shape = 'u8[8192]{0}', space=vmem, size = 0x2000, scoped, tag = 'output window, operand 0']
    %9 = vsyncpa [#allocation5], 0
    %s10 = scalar_lea.sflag [#allocation5], 1
    %11 = vsyncpa %s10, 0
    %12 = vsyncpa [#allocation8], 0
    %13 = vsyncpa [#allocation6], 0
    %s14 = scalar_lea.sflag [#allocation6], 1
    %15 = vsyncpa %s14, 0
    loop: start=0, step=1, limit=4
    $region2: #{tpu_custom_call.1} parent=1 // loop_pre_header
      _
    $region3: #{tpu_custom_call.1} parent=1 // loop_header
      %s17 = sphi 0, %s21
      %p18 = scmp.ge.s32.totalorder %s17, 4
      %s27 = sphi 0, %s29
      %s30 = sphi 0, %s27
      %s31 = sphi 0, %s30
      %s47 = sphi 0, %s31
      %s51 = sphi 0, %s51
      %s53 = sphi 0, %s51
      %s54 = sphi 0, %s53
      %s68 = sphi 0, %s54
      %s72 = sphi 0, %s72
      %s74 = sphi 0, %s72
      %s75 = sphi 0, %s74
      %s89 = sphi 0, %s75
      %s93 = sphi 0, %s93
      %s95 = sphi 0, %s93
      %s96 = sphi 0, %s95
      %s110 = sphi 0, %s96
      %s116 = sphi 0, %s118
      %s119 = sphi 0, %s116
      %s120 = sphi 0, %s119
      %s136 = sphi 0, %s120
    $region4: #{tpu_custom_call.1} parent=1 // loop_header_branch
      %20 = sbr.rel (%p18) target = $region8
    $region5: #{tpu_custom_call.1} parent=1 // loop_body
      %s22 = ssub.s32 %s17, 1
      %s23 = ssub.s32 %s17, 2
      %s24 = sadd.s32 %s17, 1
      %s25 = ssub.s32 %s17, %s24
      %p26 = scmp.eq.s32.totalorder %s25, 0
      %s28 = sadd.s32 %s27, 1
      %s29 = scalar_select %p26, %s27, %s28
      %p32 = pneg %p26
      %p33 = scmp.eq.s32.totalorder %s17, 1
      %p34 = por %p32, %p33
      %p35 = scmp.ne.s32.totalorder %s27, %s30
      %p36 = scmp.eq.s32.totalorder %s17, 0
      %p37 = por %p35, %p36
      %p38 = scmp.ne.s32.totalorder %s27, %s30
      %p39 = scmp.eq.s32.totalorder %s22, 1
      %p40 = por %p38, %p39
      %p41 = scmp.ne.s32.totalorder %s30, %s31
      %p42 = scmp.eq.s32.totalorder %s22, 0
      %p43 = por %p41, %p42
      %p44 = scmp.ne.s32.totalorder %s30, %s31
      %p45 = scmp.eq.s32.totalorder %s23, 1
      %p46 = por %p44, %p45
      %p48 = scmp.ne.s32.totalorder %s31, %s47
      %p49 = scmp.eq.s32.totalorder %s23, 0
      %p50 = por %p48, %p49
      %s52 = sadd.s32 %s51, 1
      %p55 = scmp.eq.s32.totalorder %s17, 1
      %p56 = scmp.ne.s32.totalorder %s51, %s53
      %p57 = scmp.eq.s32.totalorder %s17, 0
      %p58 = por %p56, %p57
      %p59 = scmp.ne.s32.totalorder %s51, %s53
      %p60 = scmp.eq.s32.totalorder %s22, 1
      %p61 = por %p59, %p60
      %p62 = scmp.ne.s32.totalorder %s53, %s54
      %p63 = scmp.eq.s32.totalorder %s22, 0
      %p64 = por %p62, %p63
      %p65 = scmp.ne.s32.totalorder %s53, %s54
      %p66 = scmp.eq.s32.totalorder %s23, 1
      %p67 = por %p65, %p66
      %p69 = scmp.ne.s32.totalorder %s54, %s68
      %p70 = scmp.eq.s32.totalorder %s23, 0
      %p71 = por %p69, %p70
      %s73 = sadd.s32 %s72, 1
      %p76 = scmp.eq.s32.totalorder %s17, 1
      %p77 = scmp.ne.s32.totalorder %s72, %s74
      %p78 = scmp.eq.s32.totalorder %s17, 0
      %p79 = por %p77, %p78
      %p80 = scmp.ne.s32.totalorder %s72, %s74
      %p81 = scmp.eq.s32.totalorder %s22, 1
      %p82 = por %p80, %p81
      %p83 = scmp.ne.s32.totalorder %s74, %s75
      %p84 = scmp.eq.s32.totalorder %s22, 0
      %p85 = por %p83, %p84
      %p86 = scmp.ne.s32.totalorder %s74, %s75
      %p87 = scmp.eq.s32.totalorder %s23, 1
      %p88 = por %p86, %p87
      %p90 = scmp.ne.s32.totalorder %s75, %s89
      %p91 = scmp.eq.s32.totalorder %s23, 0
      %p92 = por %p90, %p91
      %s94 = sadd.s32 %s93, 1
      %p97 = scmp.eq.s32.totalorder %s17, 1
      %p98 = scmp.ne.s32.totalorder %s93, %s95
      %p99 = scmp.eq.s32.totalorder %s17, 0
      %p100 = por %p98, %p99
      %p101 = scmp.ne.s32.totalorder %s93, %s95
      %p102 = scmp.eq.s32.totalorder %s22, 1
      %p103 = por %p101, %p102
      %p104 = scmp.ne.s32.totalorder %s95, %s96
      %p105 = scmp.eq.s32.totalorder %s22, 0
      %p106 = por %p104, %p105
      %p107 = scmp.ne.s32.totalorder %s95, %s96
      %p108 = scmp.eq.s32.totalorder %s23, 1
      %p109 = por %p107, %p108
      %p111 = scmp.ne.s32.totalorder %s96, %s110
      %p112 = scmp.eq.s32.totalorder %s23, 0
      %p113 = por %p111, %p112
      %s114 = ssub.s32 %s17, %s24
      %p115 = scmp.eq.s32.totalorder %s114, 0
      %s117 = sadd.s32 %s116, 1
      %s118 = scalar_select %p115, %s116, %s117
      %p121 = pneg %p115
      %p122 = scmp.eq.s32.totalorder %s17, 1
      %p123 = por %p121, %p122
      %p124 = scmp.ne.s32.totalorder %s116, %s119
      %p125 = scmp.eq.s32.totalorder %s17, 0
      %p126 = por %p124, %p125
      %p127 = scmp.ne.s32.totalorder %s116, %s119
      %p128 = scmp.eq.s32.totalorder %s22, 1
      %p129 = por %p127, %p128
      %p130 = scmp.ne.s32.totalorder %s119, %s120
      %p131 = scmp.eq.s32.totalorder %s22, 0
      %p132 = por %p130, %p131
      %p133 = scmp.ne.s32.totalorder %s119, %s120
      %p134 = scmp.eq.s32.totalorder %s23, 1
      %p135 = por %p133, %p134
      %p137 = scmp.ne.s32.totalorder %s120, %s136
      %p138 = scmp.eq.s32.totalorder %s23, 0
      %p139 = por %p137, %p138
      %p140 = scmp.le.s32.totalorder 1, %s17
      %p141 = scmp.lt.s32.totalorder %s17, 3
      %p142 = pnand %p140, %p141
      %p143 = pneg %p142
      // Predicated region
      $region9: #{tpu_custom_call.1} parent=5 // pred_check
        _
      $region10: #{tpu_custom_call.1} parent=5 // pred_check_branch
        %145 = sbr.rel (%p142) target = $region12
      $region11: #{tpu_custom_call.1} parent=5 // pred_region
        %s146 = ssub.s32 %s17, 1
        // Predicated region
        $region13: #{tpu_custom_call.1} parent=11 // pred_check
          %p147 = pneg %p64
        $region14: #{tpu_custom_call.1} parent=11 // pred_check_branch
          %149 = sbr.rel (%p147) target = $region16
        $region15: #{tpu_custom_call.1} parent=11 // pred_region
          %s151 = ssub.s32 3072, 3072
          %152 = vsyncadd [#allocation8], %s151
          %s153 = sshll.u32 [#allocation7], 4
          %s154 = int_to_ptr.vmem [resolvable:$true] %s153
          %159 = dma.hbm_to_vmem [thread:$0]  %s1, 3072, %s154, [#allocation8], 64, 64, 4
        $region16: #{tpu_custom_call.1} parent=11 // pred_fallthru
          _
        // Predicated region
        $region17: #{tpu_custom_call.1} parent=11 // pred_check
          %p160 = pneg %p85
        $region18: #{tpu_custom_call.1} parent=11 // pred_check_branch
          %162 = sbr.rel (%p160) target = $region20
        $region19: #{tpu_custom_call.1} parent=11 // pred_region
          %s164 = ssub.s32 3072, 3072
          %165 = vsyncadd [#allocation8], %s164
          %s166 = sshll.u32 [#allocation9], 4
          %s167 = int_to_ptr.vmem [resolvable:$true] %s166
          %172 = dma.hbm_to_vmem [thread:$0]  %s2, 3072, %s167, [#allocation8], 64, 64, 4
        $region20: #{tpu_custom_call.1} parent=11 // pred_fallthru
          _
        // Predicated region
        $region21: #{tpu_custom_call.1} parent=11 // pred_check
          %p173 = pneg %p106
        $region22: #{tpu_custom_call.1} parent=11 // pred_check_branch
          %175 = sbr.rel (%p173) target = $region24
        $region23: #{tpu_custom_call.1} parent=11 // pred_region
          _
        $region24: #{tpu_custom_call.1} parent=11 // pred_fallthru
          _
      $region12: #{tpu_custom_call.1} parent=5 // pred_fallthru
        _
      %p176 = scmp.lt.s32.totalorder %s17, 2
      // Predicated region
      $region25: #{tpu_custom_call.1} parent=5 // pred_check
        %p177 = pneg %p176
      $region26: #{tpu_custom_call.1} parent=5 // pred_check_branch
        %179 = sbr.rel (%p177) target = $region28
      $region27: #{tpu_custom_call.1} parent=5 // pred_region
        // Predicated region
        $region29: #{tpu_custom_call.1} parent=27 // pred_check
          %p180 = pneg %p37
        $region30: #{tpu_custom_call.1} parent=27 // pred_check_branch
          %182 = sbr.rel (%p180) target = $region32
        $region31: #{tpu_custom_call.1} parent=27 // pred_region
          %s183 = sand.u32 %s27, 1
          %s184 = scalar_lea.sflag [#allocation5], %s183
          %s185 = sand.u32 %s27, 1
          %s186 = smul.addr %s185, 8
          %s187 = scalar_lea.vmem [#allocation4], %s186
          %s189 = ssub.s32 128, 128
          %190 = vsyncadd %s184, %s189
          %s191 = smul.addr %s17, 128
          %s192 = scalar_lea.hbm %s0, %s191
          %s194 = sshll.u32 %s187, 4
          %s195 = int_to_ptr.vmem [resolvable:$true] %s194
          %197 = dma.hbm_to_vmem [thread:$0]  %s192, 128, %s195, %s184
        $region32: #{tpu_custom_call.1} parent=27 // pred_fallthru
          _
      $region28: #{tpu_custom_call.1} parent=5 // pred_fallthru
        _
      %p198 = scmp.le.s32.totalorder 1, %s17
      %p199 = scmp.lt.s32.totalorder %s17, 3
      %p200 = pnand %p198, %p199
      %p201 = pneg %p200
      // Predicated region
      $region33: #{tpu_custom_call.1} parent=5 // pred_check
        _
      $region34: #{tpu_custom_call.1} parent=5 // pred_check_branch
        %203 = sbr.rel (%p200) target = $region36
      $region35: #{tpu_custom_call.1} parent=5 // pred_region
        %s204 = ssub.s32 %s17, 1
        %s205 = sand.u32 %s30, 1
        %s206 = scalar_lea.sflag [#allocation5], %s205
        %s207 = sand.u32 %s30, 1
        %s208 = smul.addr %s207, 8
        %s209 = scalar_lea.vmem [#allocation4], %s208
        // Predicated region
        $region37: #{tpu_custom_call.1} parent=35 // pred_check
          %p210 = pneg %p43
        $region38: #{tpu_custom_call.1} parent=35 // pred_check_branch
          %212 = sbr.rel (%p210) target = $region40
        $region39: #{tpu_custom_call.1} parent=35 // pred_region
          %213 = dma.done %s206, 128
        $region40: #{tpu_custom_call.1} parent=35 // pred_fallthru
          _
        // Predicated region
        $region41: #{tpu_custom_call.1} parent=35 // pred_check
          %p214 = pneg %p64
        $region42: #{tpu_custom_call.1} parent=35 // pred_check_branch
          %216 = sbr.rel (%p214) target = $region44
        $region43: #{tpu_custom_call.1} parent=35 // pred_region
          %217 = dma.done [#allocation8], 3072
        $region44: #{tpu_custom_call.1} parent=35 // pred_fallthru
          _
        // Predicated region
        $region45: #{tpu_custom_call.1} parent=35 // pred_check
          %p218 = pneg %p85
        $region46: #{tpu_custom_call.1} parent=35 // pred_check_branch
          %220 = sbr.rel (%p218) target = $region48
        $region47: #{tpu_custom_call.1} parent=35 // pred_region
          %221 = dma.done [#allocation8], 3072
        $region48: #{tpu_custom_call.1} parent=35 // pred_fallthru
          _
        %s222 = sand.u32 %s30, 1
        %s223 = scalar_lea.sflag [#allocation5], %s222
        %s224 = sand.u32 %s30, 1
        %s225 = smul.addr %s224, 8
        %s226 = scalar_lea.vmem [#allocation4], %s225
        %p227 = pneg %p43
        %p228 = pneg %p40
        %p229 = pneg %p64
        %p230 = pneg %p61
        %p231 = pneg %p85
        %p232 = pneg %p82
        %p233 = pneg %p106
        %p234 = pneg %p103
        %p235 = pneg %p132
        %p236 = pneg %p129
        %s237 = sand.u32 %s119, 1
        %s238 = scalar_lea.sflag [#allocation6], %s237
        %s239 = sand.u32 %s119, 1
        %s240 = smul.addr %s239, 8
        %s241 = scalar_lea.vmem [#allocation10], %s240
        %v243 = vld [vmem:[%s3] sm:$0x1]
        %v244 = vld [vmem:[%s3 + $0x1] sm:$0x1]
        %v245 = vld [vmem:[%s209] sm:$0xff]
        %246 = vst [vmem:[#allocation2] sm:$0x1] 0.0
        %247 = vst [vmem:[#allocation2 + $0x9] sm:$0x1] 0.0
        %248 = vst [vmem:[#allocation2 + $0x1] sm:$0xff] %v245
        %v249 = vld [vmem:[#allocation2] sm:$0xff]
        %v250 = vpack.c.bf16 %v249, %v249
        %v251 = vld [vmem:[#allocation7] sm:$0xf]
        %v252 = vld [vmem:[#allocation7 + $0x4] sm:$0xf]
        %v253 = vld [vmem:[#allocation7 + $0x8] sm:$0xf]
        %v254 = vld [vmem:[#allocation7 + $0xc] sm:$0xf]
        %v255 = vld [vmem:[#allocation7 + $0x10] sm:$0xf]
        %v256 = vld [vmem:[#allocation7 + $0x14] sm:$0xf]
        %v257 = vld [vmem:[#allocation7 + $0x18] sm:$0xf]
        %v258 = vld [vmem:[#allocation7 + $0x1c] sm:$0xf]
        %v259 = vld [vmem:[#allocation7 + $0x20] sm:$0xf]
        %v260 = vld [vmem:[#allocation7 + $0x24] sm:$0xf]
        %v261 = vld [vmem:[#allocation7 + $0x28] sm:$0xf]
        %v262 = vld [vmem:[#allocation7 + $0x2c] sm:$0xf]
        %v263 = vld [vmem:[#allocation7 + $0x30] sm:$0xf]
        %v264 = vld [vmem:[#allocation7 + $0x34] sm:$0xf]
        %v265 = vld [vmem:[#allocation7 + $0x38] sm:$0xf]
        %v266 = vld [vmem:[#allocation7 + $0x3c] sm:$0xf]
        %v267 = vld [vmem:[#allocation2 + $0x1] sm:$0xff]
        %v268 = vpack.c.bf16 %v267, %v267
        %s269 = scalar_lea.vmem [#allocation7], 64
        %v270 = vld [vmem:[%s269] sm:$0xf]
        %v271 = vld [vmem:[%s269 + $0x4] sm:$0xf]
        %v272 = vld [vmem:[%s269 + $0x8] sm:$0xf]
        %v273 = vld [vmem:[%s269 + $0xc] sm:$0xf]
        %v274 = vld [vmem:[%s269 + $0x10] sm:$0xf]
        %v275 = vld [vmem:[%s269 + $0x14] sm:$0xf]
        %v276 = vld [vmem:[%s269 + $0x18] sm:$0xf]
        %v277 = vld [vmem:[%s269 + $0x1c] sm:$0xf]
        %v278 = vld [vmem:[%s269 + $0x20] sm:$0xf]
        %v279 = vld [vmem:[%s269 + $0x24] sm:$0xf]
        %v280 = vld [vmem:[%s269 + $0x28] sm:$0xf]
        %v281 = vld [vmem:[%s269 + $0x2c] sm:$0xf]
        %v282 = vld [vmem:[%s269 + $0x30] sm:$0xf]
        %v283 = vld [vmem:[%s269 + $0x34] sm:$0xf]
        %v284 = vld [vmem:[%s269 + $0x38] sm:$0xf]
        %v285 = vld [vmem:[%s269 + $0x3c] sm:$0xf]
        %v302 = vunpack.c.l.b16 %v270
        %v303 = vunpack.c.l.b16 %v271
        %v304 = vunpack.c.l.b16 %v272
        %v305 = vunpack.c.l.b16 %v273
        %v306 = vunpack.c.l.b16 %v274
        %v307 = vunpack.c.l.b16 %v275
        %v308 = vunpack.c.l.b16 %v276
        %v309 = vunpack.c.l.b16 %v277
        %v310 = vunpack.c.l.b16 %v278
        %v311 = vunpack.c.l.b16 %v279
        %v312 = vunpack.c.l.b16 %v280
        %v313 = vunpack.c.l.b16 %v281
        %v314 = vunpack.c.l.b16 %v282
        %v315 = vunpack.c.l.b16 %v283
        %v316 = vunpack.c.l.b16 %v284
        %v317 = vunpack.c.l.b16 %v285
        %v318 = vpack.c.b16 %v303, %v302
        %v319 = vpack.c.b16 %v305, %v304
        %v320 = vpack.c.b16 %v307, %v306
        %v321 = vpack.c.b16 %v309, %v308
        %v322 = vpack.c.b16 %v311, %v310
        %v323 = vpack.c.b16 %v313, %v312
        %v324 = vpack.c.b16 %v315, %v314
        %v325 = vpack.c.b16 %v317, %v316
        %334 = vmatprep.subr.bf16.mxu0 0
        %335 = vmatpush1.bf16.msra.mxu0 %v325
        %336 = vmatprep.subr.bf16.mxu0 0
        %337 = vmatpush1.bf16.msra.mxu0 %v324
        %338 = vmatprep.subr.bf16.mxu0 0
        %339 = vmatpush1.bf16.msra.mxu0 %v323
        %340 = vmatprep.subr.bf16.mxu0 0
        %341 = vmatpush1.bf16.msra.mxu0 %v322
        %342 = vmatprep.subr.bf16.mxu0 0
        %343 = vmatpush1.bf16.msra.mxu0 %v321
        %344 = vmatprep.subr.bf16.mxu0 0
        %345 = vmatpush1.bf16.msra.mxu0 %v320
        %346 = vmatprep.subr.bf16.mxu0 0
        %347 = vmatpush1.bf16.msra.mxu0 %v319
        %348 = vmatprep.subr.bf16.mxu0 0
        %349 = vmatpush1.bf16.msra.mxu0 %v318
        %350 = vmatprep.subr.bf16.mxu0 0
        %351 = vmatpush2.bf16.msra.mxu0 0
        %352 = vmatprep.subr.bf16.mxu0 0
        %353 = vmatpush2.bf16.msra.mxu0 0
        %354 = vmatprep.subr.bf16.mxu0 0
        %355 = vmatpush2.bf16.msra.mxu0 0
        %356 = vmatprep.subr.bf16.mxu0 0
        %357 = vmatpush2.bf16.msra.mxu0 0
        %358 = vmatprep.subr.bf16.mxu0 0
        %359 = vmatpush2.bf16.msra.mxu0 0
        %360 = vmatprep.subr.bf16.mxu0 0
        %361 = vmatpush2.bf16.msra.mxu0 0
        %362 = vmatprep.subr.bf16.mxu0 0
        %363 = vmatpush2.bf16.msra.mxu0 0
        %364 = vmatprep.subr.bf16.mxu0 0
        %365 = vmatpush2.bf16.msra.mxu0 0
        %366 = vmatprep.mubr.bf16.mxu0 0
        %367 = vmatmul.mubr.bf16.gmra.mxu0 %v268
        %v368 = vpop.f32.mrf.mxu0
        %v369 = vadd.f32 0.0, %v368
        %v370 = vpop.f32.mrf.mxu0
        %v371 = vpop.f32.mrf.mxu0
        %v372 = vpop.f32.mrf.mxu0
        %373 = vdwg.mxu0
        %v390 = vunpack.c.l.b16 %v251
        %v391 = vunpack.c.l.b16 %v252
        %v392 = vunpack.c.l.b16 %v253
        %v393 = vunpack.c.l.b16 %v254
        %v394 = vunpack.c.l.b16 %v255
        %v395 = vunpack.c.l.b16 %v256
        %v396 = vunpack.c.l.b16 %v257
        %v397 = vunpack.c.l.b16 %v258
        %v398 = vunpack.c.l.b16 %v259
        %v399 = vunpack.c.l.b16 %v260
        %v400 = vunpack.c.l.b16 %v261
        %v401 = vunpack.c.l.b16 %v262
        %v402 = vunpack.c.l.b16 %v263
        %v403 = vunpack.c.l.b16 %v264
        %v404 = vunpack.c.l.b16 %v265
        %v405 = vunpack.c.l.b16 %v266
        %v406 = vpack.c.b16 %v391, %v390
        %v407 = vpack.c.b16 %v393, %v392
        %v408 = vpack.c.b16 %v395, %v394
        %v409 = vpack.c.b16 %v397, %v396
        %v410 = vpack.c.b16 %v399, %v398
        %v411 = vpack.c.b16 %v401, %v400
        %v412 = vpack.c.b16 %v403, %v402
        %v413 = vpack.c.b16 %v405, %v404
        %422 = vmatprep.subr.bf16.mxu0 0
        %423 = vmatpush1.bf16.msra.mxu0 %v413
        %424 = vmatprep.subr.bf16.mxu0 0
        %425 = vmatpush1.bf16.msra.mxu0 %v412
        %426 = vmatprep.subr.bf16.mxu0 0
        %427 = vmatpush1.bf16.msra.mxu0 %v411
        %428 = vmatprep.subr.bf16.mxu0 0
        %429 = vmatpush1.bf16.msra.mxu0 %v410
        %430 = vmatprep.subr.bf16.mxu0 0
        %431 = vmatpush1.bf16.msra.mxu0 %v409
        %432 = vmatprep.subr.bf16.mxu0 0
        %433 = vmatpush1.bf16.msra.mxu0 %v408
        %434 = vmatprep.subr.bf16.mxu0 0
        %435 = vmatpush1.bf16.msra.mxu0 %v407
        %436 = vmatprep.subr.bf16.mxu0 0
        %437 = vmatpush1.bf16.msra.mxu0 %v406
        %438 = vmatprep.subr.bf16.mxu0 0
        %439 = vmatpush2.bf16.msra.mxu0 0
        %440 = vmatprep.subr.bf16.mxu0 0
        %441 = vmatpush2.bf16.msra.mxu0 0
        %442 = vmatprep.subr.bf16.mxu0 0
        %443 = vmatpush2.bf16.msra.mxu0 0
        %444 = vmatprep.subr.bf16.mxu0 0
        %445 = vmatpush2.bf16.msra.mxu0 0
        %446 = vmatprep.subr.bf16.mxu0 0
        %447 = vmatpush2.bf16.msra.mxu0 0
        %448 = vmatprep.subr.bf16.mxu0 0
        %449 = vmatpush2.bf16.msra.mxu0 0
        %450 = vmatprep.subr.bf16.mxu0 0
        %451 = vmatpush2.bf16.msra.mxu0 0
        %452 = vmatprep.subr.bf16.mxu0 0
        %453 = vmatpush2.bf16.msra.mxu0 0
        %454 = vmatprep.mubr.bf16.mxu0 0
        %455 = vmatmul.mubr.bf16.gmra.mxu0 %v250
        %v456 = vpop.f32.mrf.mxu0
        %v457 = vadd.f32 %v369, %v456
        %v458 = vpop.f32.mrf.mxu0
        %v459 = vpop.f32.mrf.mxu0
        %v460 = vpop.f32.mrf.mxu0
        %461 = vdwg.mxu0
        %v462 = vld [vmem:[#allocation2 + $0x2] sm:$0xff]
        %v463 = vpack.c.bf16 %v462, %v462
        %s464 = scalar_lea.vmem [#allocation7], 128
        %v465 = vld [vmem:[%s464] sm:$0xf]
        %v466 = vld [vmem:[%s464 + $0x4] sm:$0xf]
        %v467 = vld [vmem:[%s464 + $0x8] sm:$0xf]
        %v468 = vld [vmem:[%s464 + $0xc] sm:$0xf]
        %v469 = vld [vmem:[%s464 + $0x10] sm:$0xf]
        %v470 = vld [vmem:[%s464 + $0x14] sm:$0xf]
        %v471 = vld [vmem:[%s464 + $0x18] sm:$0xf]
        %v472 = vld [vmem:[%s464 + $0x1c] sm:$0xf]
        %v473 = vld [vmem:[%s464 + $0x20] sm:$0xf]
        %v474 = vld [vmem:[%s464 + $0x24] sm:$0xf]
        %v475 = vld [vmem:[%s464 + $0x28] sm:$0xf]
        %v476 = vld [vmem:[%s464 + $0x2c] sm:$0xf]
        %v477 = vld [vmem:[%s464 + $0x30] sm:$0xf]
        %v478 = vld [vmem:[%s464 + $0x34] sm:$0xf]
        %v479 = vld [vmem:[%s464 + $0x38] sm:$0xf]
        %v480 = vld [vmem:[%s464 + $0x3c] sm:$0xf]
        %v497 = vunpack.c.l.b16 %v465
        %v498 = vunpack.c.l.b16 %v466
        %v499 = vunpack.c.l.b16 %v467
        %v500 = vunpack.c.l.b16 %v468
        %v501 = vunpack.c.l.b16 %v469
        %v502 = vunpack.c.l.b16 %v470
        %v503 = vunpack.c.l.b16 %v471
        %v504 = vunpack.c.l.b16 %v472
        %v505 = vunpack.c.l.b16 %v473
        %v506 = vunpack.c.l.b16 %v474
        %v507 = vunpack.c.l.b16 %v475
        %v508 = vunpack.c.l.b16 %v476
        %v509 = vunpack.c.l.b16 %v477
        %v510 = vunpack.c.l.b16 %v478
        %v511 = vunpack.c.l.b16 %v479
        %v512 = vunpack.c.l.b16 %v480
        %v513 = vpack.c.b16 %v498, %v497
        %v514 = vpack.c.b16 %v500, %v499
        %v515 = vpack.c.b16 %v502, %v501
        %v516 = vpack.c.b16 %v504, %v503
        %v517 = vpack.c.b16 %v506, %v505
        %v518 = vpack.c.b16 %v508, %v507
        %v519 = vpack.c.b16 %v510, %v509
        %v520 = vpack.c.b16 %v512, %v511
        %529 = vmatprep.subr.bf16.mxu0 0
        %530 = vmatpush1.bf16.msra.mxu0 %v520
        %531 = vmatprep.subr.bf16.mxu0 0
        %532 = vmatpush1.bf16.msra.mxu0 %v519
        %533 = vmatprep.subr.bf16.mxu0 0
        %534 = vmatpush1.bf16.msra.mxu0 %v518
        %535 = vmatprep.subr.bf16.mxu0 0
        %536 = vmatpush1.bf16.msra.mxu0 %v517
        %537 = vmatprep.subr.bf16.mxu0 0
        %538 = vmatpush1.bf16.msra.mxu0 %v516
        %539 = vmatprep.subr.bf16.mxu0 0
        %540 = vmatpush1.bf16.msra.mxu0 %v515
        %541 = vmatprep.subr.bf16.mxu0 0
        %542 = vmatpush1.bf16.msra.mxu0 %v514
        %543 = vmatprep.subr.bf16.mxu0 0
        %544 = vmatpush1.bf16.msra.mxu0 %v513
        %545 = vmatprep.subr.bf16.mxu0 0
        %546 = vmatpush2.bf16.msra.mxu0 0
        %547 = vmatprep.subr.bf16.mxu0 0
        %548 = vmatpush2.bf16.msra.mxu0 0
        %549 = vmatprep.subr.bf16.mxu0 0
        %550 = vmatpush2.bf16.msra.mxu0 0
        %551 = vmatprep.subr.bf16.mxu0 0
        %552 = vmatpush2.bf16.msra.mxu0 0
        %553 = vmatprep.subr.bf16.mxu0 0
        %554 = vmatpush2.bf16.msra.mxu0 0
        %555 = vmatprep.subr.bf16.mxu0 0
        %556 = vmatpush2.bf16.msra.mxu0 0
        %557 = vmatprep.subr.bf16.mxu0 0
        %558 = vmatpush2.bf16.msra.mxu0 0
        %559 = vmatprep.subr.bf16.mxu0 0
        %560 = vmatpush2.bf16.msra.mxu0 0
        %561 = vmatprep.mubr.bf16.mxu0 0
        %562 = vmatmul.mubr.bf16.gmra.mxu0 %v463
        %v563 = vpop.f32.mrf.mxu0
        %v564 = vadd.f32 0.0, %v563
        %v565 = vpop.f32.mrf.mxu0
        %v566 = vpop.f32.mrf.mxu0
        %v567 = vpop.f32.mrf.mxu0
        %568 = vdwg.mxu0
        %v569 = vadd.f32 %v457, %v564
        %v570 = vlaneseq
        %v571 = vshrl.u32 %v570, 7
        %v572 = vsub.s32 0, %v571
        %v573 = vrot.slane %v243, %v572
        %v574 = vadd.f32 %v569, %v573
        %v575 = vmax.f32 %v574, 0.0
        %576 = vst [vmem:[#allocation3] sm:$0x1] 0.0
        %577 = vst [vmem:[#allocation3 + $0x9] sm:$0x1] 0.0
        %578 = vst [vmem:[#allocation3 + $0x1] sm:$0xff] %v575
        %v579 = vld [vmem:[#allocation3] sm:$0xff]
        %v580 = vpack.c.bf16 %v579, %v579
        %v581 = vld [vmem:[#allocation9] sm:$0xf]
        %v582 = vld [vmem:[#allocation9 + $0x4] sm:$0xf]
        %v583 = vld [vmem:[#allocation9 + $0x8] sm:$0xf]
        %v584 = vld [vmem:[#allocation9 + $0xc] sm:$0xf]
        %v585 = vld [vmem:[#allocation9 + $0x10] sm:$0xf]
        %v586 = vld [vmem:[#allocation9 + $0x14] sm:$0xf]
        %v587 = vld [vmem:[#allocation9 + $0x18] sm:$0xf]
        %v588 = vld [vmem:[#allocation9 + $0x1c] sm:$0xf]
        %v589 = vld [vmem:[#allocation9 + $0x20] sm:$0xf]
        %v590 = vld [vmem:[#allocation9 + $0x24] sm:$0xf]
        %v591 = vld [vmem:[#allocation9 + $0x28] sm:$0xf]
        %v592 = vld [vmem:[#allocation9 + $0x2c] sm:$0xf]
        %v593 = vld [vmem:[#allocation9 + $0x30] sm:$0xf]
        %v594 = vld [vmem:[#allocation9 + $0x34] sm:$0xf]
        %v595 = vld [vmem:[#allocation9 + $0x38] sm:$0xf]
        %v596 = vld [vmem:[#allocation9 + $0x3c] sm:$0xf]
        %v597 = vld [vmem:[#allocation3 + $0x1] sm:$0xff]
        %v598 = vpack.c.bf16 %v597, %v597
        %s599 = scalar_lea.vmem [#allocation9], 64
        %v600 = vld [vmem:[%s599] sm:$0xf]
        %v601 = vld [vmem:[%s599 + $0x4] sm:$0xf]
        %v602 = vld [vmem:[%s599 + $0x8] sm:$0xf]
        %v603 = vld [vmem:[%s599 + $0xc] sm:$0xf]
        %v604 = vld [vmem:[%s599 + $0x10] sm:$0xf]
        %v605 = vld [vmem:[%s599 + $0x14] sm:$0xf]
        %v606 = vld [vmem:[%s599 + $0x18] sm:$0xf]
        %v607 = vld [vmem:[%s599 + $0x1c] sm:$0xf]
        %v608 = vld [vmem:[%s599 + $0x20] sm:$0xf]
        %v609 = vld [vmem:[%s599 + $0x24] sm:$0xf]
        %v610 = vld [vmem:[%s599 + $0x28] sm:$0xf]
        %v611 = vld [vmem:[%s599 + $0x2c] sm:$0xf]
        %v612 = vld [vmem:[%s599 + $0x30] sm:$0xf]
        %v613 = vld [vmem:[%s599 + $0x34] sm:$0xf]
        %v614 = vld [vmem:[%s599 + $0x38] sm:$0xf]
        %v615 = vld [vmem:[%s599 + $0x3c] sm:$0xf]
        %v632 = vunpack.c.l.b16 %v600
        %v633 = vunpack.c.l.b16 %v601
        %v634 = vunpack.c.l.b16 %v602
        %v635 = vunpack.c.l.b16 %v603
        %v636 = vunpack.c.l.b16 %v604
        %v637 = vunpack.c.l.b16 %v605
        %v638 = vunpack.c.l.b16 %v606
        %v639 = vunpack.c.l.b16 %v607
        %v640 = vunpack.c.l.b16 %v608
        %v641 = vunpack.c.l.b16 %v609
        %v642 = vunpack.c.l.b16 %v610
        %v643 = vunpack.c.l.b16 %v611
        %v644 = vunpack.c.l.b16 %v612
        %v645 = vunpack.c.l.b16 %v613
        %v646 = vunpack.c.l.b16 %v614
        %v647 = vunpack.c.l.b16 %v615
        %v648 = vpack.c.b16 %v633, %v632
        %v649 = vpack.c.b16 %v635, %v634
        %v650 = vpack.c.b16 %v637, %v636
        %v651 = vpack.c.b16 %v639, %v638
        %v652 = vpack.c.b16 %v641, %v640
        %v653 = vpack.c.b16 %v643, %v642
        %v654 = vpack.c.b16 %v645, %v644
        %v655 = vpack.c.b16 %v647, %v646
        %664 = vmatprep.subr.bf16.mxu0 0
        %665 = vmatpush1.bf16.msra.mxu0 %v655
        %666 = vmatprep.subr.bf16.mxu0 0
        %667 = vmatpush1.bf16.msra.mxu0 %v654
        %668 = vmatprep.subr.bf16.mxu0 0
        %669 = vmatpush1.bf16.msra.mxu0 %v653
        %670 = vmatprep.subr.bf16.mxu0 0
        %671 = vmatpush1.bf16.msra.mxu0 %v652
        %672 = vmatprep.subr.bf16.mxu0 0
        %673 = vmatpush1.bf16.msra.mxu0 %v651
        %674 = vmatprep.subr.bf16.mxu0 0
        %675 = vmatpush1.bf16.msra.mxu0 %v650
        %676 = vmatprep.subr.bf16.mxu0 0
        %677 = vmatpush1.bf16.msra.mxu0 %v649
        %678 = vmatprep.subr.bf16.mxu0 0
        %679 = vmatpush1.bf16.msra.mxu0 %v648
        %680 = vmatprep.subr.bf16.mxu0 0
        %681 = vmatpush2.bf16.msra.mxu0 0
        %682 = vmatprep.subr.bf16.mxu0 0
        %683 = vmatpush2.bf16.msra.mxu0 0
        %684 = vmatprep.subr.bf16.mxu0 0
        %685 = vmatpush2.bf16.msra.mxu0 0
        %686 = vmatprep.subr.bf16.mxu0 0
        %687 = vmatpush2.bf16.msra.mxu0 0
        %688 = vmatprep.subr.bf16.mxu0 0
        %689 = vmatpush2.bf16.msra.mxu0 0
        %690 = vmatprep.subr.bf16.mxu0 0
        %691 = vmatpush2.bf16.msra.mxu0 0
        %692 = vmatprep.subr.bf16.mxu0 0
        %693 = vmatpush2.bf16.msra.mxu0 0
        %694 = vmatprep.subr.bf16.mxu0 0
        %695 = vmatpush2.bf16.msra.mxu0 0
        %696 = vmatprep.mubr.bf16.mxu0 0
        %697 = vmatmul.mubr.bf16.gmra.mxu0 %v598
        %v698 = vpop.f32.mrf.mxu0
        %v699 = vadd.f32 0.0, %v698
        %v700 = vpop.f32.mrf.mxu0
        %v701 = vpop.f32.mrf.mxu0
        %v702 = vpop.f32.mrf.mxu0
        %703 = vdwg.mxu0
        %v720 = vunpack.c.l.b16 %v581
        %v721 = vunpack.c.l.b16 %v582
        %v722 = vunpack.c.l.b16 %v583
        %v723 = vunpack.c.l.b16 %v584
        %v724 = vunpack.c.l.b16 %v585
        %v725 = vunpack.c.l.b16 %v586
        %v726 = vunpack.c.l.b16 %v587
        %v727 = vunpack.c.l.b16 %v588
        %v728 = vunpack.c.l.b16 %v589
        %v729 = vunpack.c.l.b16 %v590
        %v730 = vunpack.c.l.b16 %v591
        %v731 = vunpack.c.l.b16 %v592
        %v732 = vunpack.c.l.b16 %v593
        %v733 = vunpack.c.l.b16 %v594
        %v734 = vunpack.c.l.b16 %v595
        %v735 = vunpack.c.l.b16 %v596
        %v736 = vpack.c.b16 %v721, %v720
        %v737 = vpack.c.b16 %v723, %v722
        %v738 = vpack.c.b16 %v725, %v724
        %v739 = vpack.c.b16 %v727, %v726
        %v740 = vpack.c.b16 %v729, %v728
        %v741 = vpack.c.b16 %v731, %v730
        %v742 = vpack.c.b16 %v733, %v732
        %v743 = vpack.c.b16 %v735, %v734
        %752 = vmatprep.subr.bf16.mxu0 0
        %753 = vmatpush1.bf16.msra.mxu0 %v743
        %754 = vmatprep.subr.bf16.mxu0 0
        %755 = vmatpush1.bf16.msra.mxu0 %v742
        %756 = vmatprep.subr.bf16.mxu0 0
        %757 = vmatpush1.bf16.msra.mxu0 %v741
        %758 = vmatprep.subr.bf16.mxu0 0
        %759 = vmatpush1.bf16.msra.mxu0 %v740
        %760 = vmatprep.subr.bf16.mxu0 0
        %761 = vmatpush1.bf16.msra.mxu0 %v739
        %762 = vmatprep.subr.bf16.mxu0 0
        %763 = vmatpush1.bf16.msra.mxu0 %v738
        %764 = vmatprep.subr.bf16.mxu0 0
        %765 = vmatpush1.bf16.msra.mxu0 %v737
        %766 = vmatprep.subr.bf16.mxu0 0
        %767 = vmatpush1.bf16.msra.mxu0 %v736
        %768 = vmatprep.subr.bf16.mxu0 0
        %769 = vmatpush2.bf16.msra.mxu0 0
        %770 = vmatprep.subr.bf16.mxu0 0
        %771 = vmatpush2.bf16.msra.mxu0 0
        %772 = vmatprep.subr.bf16.mxu0 0
        %773 = vmatpush2.bf16.msra.mxu0 0
        %774 = vmatprep.subr.bf16.mxu0 0
        %775 = vmatpush2.bf16.msra.mxu0 0
        %776 = vmatprep.subr.bf16.mxu0 0
        %777 = vmatpush2.bf16.msra.mxu0 0
        %778 = vmatprep.subr.bf16.mxu0 0
        %779 = vmatpush2.bf16.msra.mxu0 0
        %780 = vmatprep.subr.bf16.mxu0 0
        %781 = vmatpush2.bf16.msra.mxu0 0
        %782 = vmatprep.subr.bf16.mxu0 0
        %783 = vmatpush2.bf16.msra.mxu0 0
        %784 = vmatprep.mubr.bf16.mxu0 0
        %785 = vmatmul.mubr.bf16.gmra.mxu0 %v580
        %v786 = vpop.f32.mrf.mxu0
        %v787 = vadd.f32 %v699, %v786
        %v788 = vpop.f32.mrf.mxu0
        %v789 = vpop.f32.mrf.mxu0
        %v790 = vpop.f32.mrf.mxu0
        %791 = vdwg.mxu0
        %v792 = vld [vmem:[#allocation3 + $0x2] sm:$0xff]
        %v793 = vpack.c.bf16 %v792, %v792
        %s794 = scalar_lea.vmem [#allocation9], 128
        %v795 = vld [vmem:[%s794] sm:$0xf]
        %v796 = vld [vmem:[%s794 + $0x4] sm:$0xf]
        %v797 = vld [vmem:[%s794 + $0x8] sm:$0xf]
        %v798 = vld [vmem:[%s794 + $0xc] sm:$0xf]
        %v799 = vld [vmem:[%s794 + $0x10] sm:$0xf]
        %v800 = vld [vmem:[%s794 + $0x14] sm:$0xf]
        %v801 = vld [vmem:[%s794 + $0x18] sm:$0xf]
        %v802 = vld [vmem:[%s794 + $0x1c] sm:$0xf]
        %v803 = vld [vmem:[%s794 + $0x20] sm:$0xf]
        %v804 = vld [vmem:[%s794 + $0x24] sm:$0xf]
        %v805 = vld [vmem:[%s794 + $0x28] sm:$0xf]
        %v806 = vld [vmem:[%s794 + $0x2c] sm:$0xf]
        %v807 = vld [vmem:[%s794 + $0x30] sm:$0xf]
        %v808 = vld [vmem:[%s794 + $0x34] sm:$0xf]
        %v809 = vld [vmem:[%s794 + $0x38] sm:$0xf]
        %v810 = vld [vmem:[%s794 + $0x3c] sm:$0xf]
        %v827 = vunpack.c.l.b16 %v795
        %v828 = vunpack.c.l.b16 %v796
        %v829 = vunpack.c.l.b16 %v797
        %v830 = vunpack.c.l.b16 %v798
        %v831 = vunpack.c.l.b16 %v799
        %v832 = vunpack.c.l.b16 %v800
        %v833 = vunpack.c.l.b16 %v801
        %v834 = vunpack.c.l.b16 %v802
        %v835 = vunpack.c.l.b16 %v803
        %v836 = vunpack.c.l.b16 %v804
        %v837 = vunpack.c.l.b16 %v805
        %v838 = vunpack.c.l.b16 %v806
        %v839 = vunpack.c.l.b16 %v807
        %v840 = vunpack.c.l.b16 %v808
        %v841 = vunpack.c.l.b16 %v809
        %v842 = vunpack.c.l.b16 %v810
        %v843 = vpack.c.b16 %v828, %v827
        %v844 = vpack.c.b16 %v830, %v829
        %v845 = vpack.c.b16 %v832, %v831
        %v846 = vpack.c.b16 %v834, %v833
        %v847 = vpack.c.b16 %v836, %v835
        %v848 = vpack.c.b16 %v838, %v837
        %v849 = vpack.c.b16 %v840, %v839
        %v850 = vpack.c.b16 %v842, %v841
        %859 = vmatprep.subr.bf16.mxu0 0
        %860 = vmatpush1.bf16.msra.mxu0 %v850
        %861 = vmatprep.subr.bf16.mxu0 0
        %862 = vmatpush1.bf16.msra.mxu0 %v849
        %863 = vmatprep.subr.bf16.mxu0 0
        %864 = vmatpush1.bf16.msra.mxu0 %v848
        %865 = vmatprep.subr.bf16.mxu0 0
        %866 = vmatpush1.bf16.msra.mxu0 %v847
        %867 = vmatprep.subr.bf16.mxu0 0
        %868 = vmatpush1.bf16.msra.mxu0 %v846
        %869 = vmatprep.subr.bf16.mxu0 0
        %870 = vmatpush1.bf16.msra.mxu0 %v845
        %871 = vmatprep.subr.bf16.mxu0 0
        %872 = vmatpush1.bf16.msra.mxu0 %v844
        %873 = vmatprep.subr.bf16.mxu0 0
        %874 = vmatpush1.bf16.msra.mxu0 %v843
        %875 = vmatprep.subr.bf16.mxu0 0
        %876 = vmatpush2.bf16.msra.mxu0 0
        %877 = vmatprep.subr.bf16.mxu0 0
        %878 = vmatpush2.bf16.msra.mxu0 0
        %879 = vmatprep.subr.bf16.mxu0 0
        %880 = vmatpush2.bf16.msra.mxu0 0
        %881 = vmatprep.subr.bf16.mxu0 0
        %882 = vmatpush2.bf16.msra.mxu0 0
        %883 = vmatprep.subr.bf16.mxu0 0
        %884 = vmatpush2.bf16.msra.mxu0 0
        %885 = vmatprep.subr.bf16.mxu0 0
        %886 = vmatpush2.bf16.msra.mxu0 0
        %887 = vmatprep.subr.bf16.mxu0 0
        %888 = vmatpush2.bf16.msra.mxu0 0
        %889 = vmatprep.subr.bf16.mxu0 0
        %890 = vmatpush2.bf16.msra.mxu0 0
        %891 = vmatprep.mubr.bf16.mxu0 0
        %892 = vmatmul.mubr.bf16.gmra.mxu0 %v793
        %v893 = vpop.f32.mrf.mxu0
        %v894 = vadd.f32 0.0, %v893
        %v895 = vpop.f32.mrf.mxu0
        %v896 = vpop.f32.mrf.mxu0
        %v897 = vpop.f32.mrf.mxu0
        %898 = vdwg.mxu0
        %v899 = vadd.f32 %v787, %v894
        %v900 = vlaneseq
        %v901 = vshrl.u32 %v900, 7
        %v902 = vsub.s32 0, %v901
        %v903 = vrot.slane %v244, %v902
        %v904 = vadd.f32 %v899, %v903
        %v905 = vadd.f32 %v904, %v245
        %v906 = vmax.f32 %v905, 0.0
        %907 = vst [vmem:[%s241] sm:$0xff] %v906
        %s908 = sand.u32 %s119, 1
        %s909 = scalar_lea.sflag [#allocation6], %s908
        %s910 = sand.u32 %s119, 1
        %s911 = smul.addr %s910, 8
        %s912 = scalar_lea.vmem [#allocation10], %s911
        // Predicated region
        $region49: #{tpu_custom_call.1} parent=35 // pred_check
          %p913 = pneg %p129
        $region50: #{tpu_custom_call.1} parent=35 // pred_check_branch
          %915 = sbr.rel (%p913) target = $region52
        $region51: #{tpu_custom_call.1} parent=35 // pred_region
          %s917 = ssub.s32 128, 128
          %918 = vsyncadd %s909, %s917
          %s919 = smul.addr %s22, 128
          %s920 = scalar_lea.hbm %s4, %s919
          %s922 = sshll.u32 %s912, 4
          %s923 = int_to_ptr.vmem [resolvable:$true] %s922
          %925 = dma.vmem_to_hbm [thread:$0]  %s923, 128, %s920, %s909
        $region52: #{tpu_custom_call.1} parent=35 // pred_fallthru
          _
      $region36: #{tpu_custom_call.1} parent=5 // pred_fallthru
        _
      %p926 = scmp.le.s32.totalorder 2, %s17
      // Predicated region
      $region53: #{tpu_custom_call.1} parent=5 // pred_check
        %p927 = pneg %p926
      $region54: #{tpu_custom_call.1} parent=5 // pred_check_branch
        %929 = sbr.rel (%p927) target = $region56
      $region55: #{tpu_custom_call.1} parent=5 // pred_region
        %s930 = ssub.s32 %s17, 2
        // Predicated region
        $region57: #{tpu_custom_call.1} parent=55 // pred_check
          %p931 = pneg %p135
        $region58: #{tpu_custom_call.1} parent=55 // pred_check_branch
          %933 = sbr.rel (%p931) target = $region60
        $region59: #{tpu_custom_call.1} parent=55 // pred_region
          %s934 = sand.u32 %s120, 1
          %s935 = scalar_lea.sflag [#allocation6], %s934
          %s936 = sand.u32 %s120, 1
          %s937 = smul.addr %s936, 8
          %s938 = scalar_lea.vmem [#allocation10], %s937
          %939 = dma.done %s935, 128
        $region60: #{tpu_custom_call.1} parent=55 // pred_fallthru
          _
      $region56: #{tpu_custom_call.1} parent=5 // pred_fallthru
        _
    $region6: #{tpu_custom_call.1} parent=1 // loop_footer
      %s21 = sadd.s32 1, %s17
    $region7: #{tpu_custom_call.1} parent=1 // loop_footer_branch
      %16 = sbr.rel target = $region3
    $region8: #{tpu_custom_call.1} parent=1 // loop_exit
      _
    %940 = vsyncpa [#allocation5], 1
    %s941 = scalar_lea.sflag [#allocation5], 1
    %942 = vsyncpa %s941, 1
    %943 = vsyncpa [#allocation8], 1
    %944 = vsyncpa [#allocation6], 1
    %s945 = scalar_lea.sflag [#allocation6], 1
    %946 = vsyncpa %s945, 1

</llo_original>
